<compile_context>
chip_gen: v7x
topology: tpu7x:2x2x1
jax: 0.10.0
libtpu: 0.0.40
codegen_flags: <defaults>
</compile_context>

<pallas_src>
import functools

import jax
import jax.numpy as jnp
from jax.experimental import pallas as pl
from jax.experimental.pallas import tpu as pltpu


_TILE_BYTES = 6 * 1024 * 1024         # per-buffer tile budget (f32) for the tiled path
_FUSED_SLAB_BYTES = 6 * 1024 * 1024   # max per-batch (C, HW) f32 slab for the fused path
_VMEM_LIMIT = 48 * 1024 * 1024        # <= v7x physical (64 MiB), far under v5e/v6e


# ---------------------------------------------------------------------------
# Fused single-pass kernel: pool + SE FCs + spatial attention + residual
# ---------------------------------------------------------------------------

def _fused_kernel(w1_ref, w2t_ref, sconv_ref, x_ref, o_ref, *, hw_true):
    # w1_ref:  (C, C//r)   fc1^T
    # w2t_ref: (C, C//r)   fc2 (i.e. fc2^T transposed back -> [c_out, c_hidden])
    # sconv_ref: (3,) SMEM  [w_mean, w_max, bias] of the 1x1 spatial conv
    # x_ref / o_ref: (1, C, HW)
    x = x_ref[0]                                              # (C, HW)
    c = x.shape[0]

    # --- channel attention: global average pool + 2 tiny FCs, kept as columns ---
    avg_col = jnp.sum(x, axis=1, keepdims=True) * (1.0 / hw_true)        # (C, 1)
    # h[j] = relu(sum_c avg[c] * w1[c, j])  -> cross-sublane reduce, no transpose
    h_row = jnp.maximum(
        jnp.sum(w1_ref[...] * avg_col, axis=0, keepdims=True), 0.0)      # (1, C//r)
    # ca[c] = sigmoid(sum_j w2t[c, j] * h[j]) -> cross-lane reduce, no transpose
    ca_col = jax.nn.sigmoid(
        jnp.sum(w2t_ref[...] * h_row, axis=1, keepdims=True))            # (C, 1)

    y = x * ca_col                                            # channel attention

    # --- spatial attention: per-position channel mean/max + 1x1 conv + sigmoid ---
    mean_c = jnp.sum(y, axis=0, keepdims=True) * (1.0 / c)    # (1, HW)
    max_c = jnp.max(y, axis=0, keepdims=True)                 # (1, HW)
    w_sp = jax.nn.sigmoid(sconv_ref[0] * mean_c + sconv_ref[1] * max_c + sconv_ref[2])

    o_ref[0] = x + y * w_sp                                   # residual fused in place


def _fused_path(x2, w1, w2, sconv, B, C, HW):
    Cr = w1.shape[1]
    w2t = w2.T                                                # (C, C//r)
    kernel = functools.partial(_fused_kernel, hw_true=HW)
    return pl.pallas_call(
        kernel,
        out_shape=jax.ShapeDtypeStruct((B, C, HW), jnp.float32),
        grid_spec=pltpu.PrefetchScalarGridSpec(
            num_scalar_prefetch=0,
            grid=(B,),
            in_specs=[
                pl.BlockSpec((C, Cr), lambda b: (0, 0)),               # w1
                pl.BlockSpec((C, Cr), lambda b: (0, 0)),               # w2^T
                pl.BlockSpec(memory_space=pltpu.MemorySpace.SMEM),     # sconv (3,)
                pl.BlockSpec((1, C, HW), lambda b: (b, 0, 0)),         # x slab
            ],
            out_specs=pl.BlockSpec((1, C, HW), lambda b: (b, 0, 0)),
        ),
        compiler_params=pltpu.CompilerParams(
            dimension_semantics=("parallel",),
            vmem_limit_bytes=_VMEM_LIMIT,
        ),
    )(w1, w2t, sconv, x2)


# ---------------------------------------------------------------------------
# Tiled path, pass 1: per-batch spatial sum with a lane-dense accumulator
# ---------------------------------------------------------------------------

def _pool_kernel(x_ref, sum_ref, acc_ref):
    # x_ref:   (1, C, T) tile (T is a multiple of 128)
    # sum_ref: (1, C, 1) output, resident across the HW grid axis
    # acc_ref: (C, 128) lane-dense VMEM accumulator (VPU adds per step; one
    #          cross-lane XLU reduce only at the final step)
    @pl.when(pl.program_id(1) == 0)
    def _():
        acc_ref[...] = jnp.zeros_like(acc_ref)

    x = x_ref[0]                                              # (C, T)
    n_strips = x.shape[1] // 128
    acc = acc_ref[...]
    for s in range(n_strips):                                 # static, unrolled
        acc = acc + x[:, s * 128:(s + 1) * 128]
    acc_ref[...] = acc

    @pl.when(pl.program_id(1) == pl.num_programs(1) - 1)
    def _():
        sum_ref[0] = jnp.sum(acc_ref[...], axis=1, keepdims=True)


# ---------------------------------------------------------------------------
# Tiled path, pass 2: apply channel + spatial attention + residual
# ---------------------------------------------------------------------------

def _apply_kernel(sconv_ref, ca_ref, x_ref, o_ref):
    x = x_ref[0]                                              # (C, T)
    ca = ca_ref[0]                                            # (C, 1) column
    y = x * ca                                                # channel attention

    # NOTE: block always spans the full channel dim (C is never tiled).
    inv_c = 1.0 / x.shape[0]
    mean_c = jnp.sum(y, axis=0, keepdims=True) * inv_c        # (1, T)
    max_c = jnp.max(y, axis=0, keepdims=True)                 # (1, T)
    w_sp = jax.nn.sigmoid(sconv_ref[0] * mean_c + sconv_ref[1] * max_c + sconv_ref[2])

    o_ref[0] = x + y * w_sp


def _pick_hw_tile(hw_padded, c):
    """Largest multiple of 128 dividing hw_padded with a ~6 MiB f32 tile."""
    budget_lanes = _TILE_BYTES // (4 * c)
    budget_lanes = max(128, (budget_lanes // 128) * 128)
    t = min(hw_padded, budget_lanes)
    t = max(128, (t // 128) * 128)
    while t > 128 and hw_padded % t != 0:
        t -= 128
    return t


def _tiled_path(x2, w1, w2, sconv, B, C, HW):
    # Pad HW up to a multiple of 128 (zeros do not perturb the sums; padded
    # output lanes are sliced off) so tiles are always lane-dense.
    HWp = ((HW + 127) // 128) * 128
    x2p = jnp.pad(x2, ((0, 0), (0, 0), (0, HWp - HW))) if HWp != HW else x2

    T = _pick_hw_tile(HWp, C)
    n_t = HWp // T

    # ---- Pass 1: spatial sums (B, C, 1) ----
    sums = pl.pallas_call(
        _pool_kernel,
        out_shape=jax.ShapeDtypeStruct((B, C, 1), jnp.float32),
        grid_spec=pltpu.PrefetchScalarGridSpec(
            num_scalar_prefetch=0,
            grid=(B, n_t),
            in_specs=[pl.BlockSpec((1, C, T), lambda b, t: (b, 0, t))],
            out_specs=pl.BlockSpec((1, C, 1), lambda b, t: (b, 0, 0)),
            scratch_shapes=[pltpu.VMEM((C, 128), jnp.float32)],
        ),
        compiler_params=pltpu.CompilerParams(
            dimension_semantics=("parallel", "arbitrary"),
            vmem_limit_bytes=_VMEM_LIMIT,
        ),
    )(x2p)

    # ---- Squeeze-excite FCs as batched matmuls in the wrapper (M = B) ----
    avg = sums[:, :, 0] * (1.0 / HW)                          # (B, C), true-HW mean
    h = jnp.maximum(avg @ w1, 0.0)                            # (B, C//r)
    ca = jax.nn.sigmoid(h @ w2)                               # (B, C)
    ca3 = ca[:, :, None]                                      # (B, C, 1)

    # ---- Pass 2: apply attention + residual, tiled over (B, HW) ----
    outp = pl.pallas_call(
        _apply_kernel,
        out_shape=jax.ShapeDtypeStruct((B, C, HWp), jnp.float32),
        grid_spec=pltpu.PrefetchScalarGridSpec(
            num_scalar_prefetch=0,
            grid=(B, n_t),
            in_specs=[
                pl.BlockSpec(memory_space=pltpu.MemorySpace.SMEM),     # sconv (3,)
                pl.BlockSpec((1, C, 1), lambda b, t: (b, 0, 0)),       # ca column
                pl.BlockSpec((1, C, T), lambda b, t: (b, 0, t)),       # x tile
            ],
            out_specs=pl.BlockSpec((1, C, T), lambda b, t: (b, 0, t)),
        ),
        compiler_params=pltpu.CompilerParams(
            dimension_semantics=("parallel", "parallel"),
            vmem_limit_bytes=_VMEM_LIMIT,
        ),
    )(sconv, ca3, x2p)

    return outp[:, :, :HW] if HWp != HW else outp


# ---------------------------------------------------------------------------
# Wrapper
# ---------------------------------------------------------------------------

def channel_spatial_attention(x, w1, w2, sconv, *, force_tiled=False):
    """x: (B, C, H, W) f32; w1: (C, C//r) = fc1^T; w2: (C//r, C) = fc2^T;
    sconv: (3,) = [w_mean, w_max, bias] of the 1x1 spatial conv."""
    B, C, H, W = x.shape
    HW = H * W
    x2 = x.reshape(B, C, HW)

    if (not force_tiled) and (C * HW * 4 <= _FUSED_SLAB_BYTES):
        out = _fused_path(x2, w1, w2, sconv, B, C, HW)
    else:
        out = _tiled_path(x2, w1, w2, sconv, B, C, HW)
    return out.reshape(B, C, H, W)


channel_spatial_attention = jax.jit(channel_spatial_attention,
                                    static_argnames=("force_tiled",))


def _reference(x, w1, w2, sconv):
    # pure-JAX reference mirroring the PyTorch forward
    avg = jnp.mean(x, axis=(2, 3))                            # (B, C)
    h = jnp.maximum(avg @ w1, 0.0)
    ca = jax.nn.sigmoid(h @ w2)                               # (B, C)
    y = x * ca[:, :, None, None]
    mean_c = jnp.mean(y, axis=1, keepdims=True)
    max_c = jnp.max(y, axis=1, keepdims=True)
    w_sp = jax.nn.sigmoid(sconv[0] * mean_c + sconv[1] * max_c + sconv[2])
    return x + y * w_sp


if __name__ == "__main__":
    B, C, H, W = 2, 32, 16, 16
    reduction = 16

    key = jax.random.PRNGKey(0)
    k1, k2, k3, k4, k5 = jax.random.split(key, 5)
    x = jax.random.normal(k1, (B, C, H, W), dtype=jnp.float32)
    # PyTorch Linear weight is (out, in); we store the transposed weights.
    w1 = 0.1 * jax.random.normal(k2, (C, C // reduction), dtype=jnp.float32)   # fc1^T
    w2 = 0.1 * jax.random.normal(k3, (C // reduction, C), dtype=jnp.float32)   # fc2^T
    sconv = 0.1 * jax.random.normal(k4, (3,), dtype=jnp.float32)               # [w_mean, w_max, bias]

    # Fused single-pass path (small slab).
    out = channel_spatial_attention(x, w1, w2, sconv)
    jax.block_until_ready(out)
    ref = _reference(x, w1, w2, sconv)
    assert jnp.allclose(out, ref, atol=1e-5, rtol=1e-5), "fused path mismatch"

    # Tiled two-pass path, including the HW-padding branch (HW=100 -> 128).
    x_t = jax.random.normal(k5, (B, C, 10, 10), dtype=jnp.float32)
    out_t = channel_spatial_attention(x_t, w1, w2, sconv, force_tiled=True)
    jax.block_until_ready(out_t)
    ref_t = _reference(x_t, w1, w2, sconv)
    assert jnp.allclose(out_t, ref_t, atol=1e-5, rtol=1e-5), "tiled path mismatch"

    print("KERNEL_OK")
</pallas_src>

<mosaic_0001>
module attributes {stable_mosaic.version = 11 : i64} {
  func.func @_fused_kernel(%arg0: i32, %arg1: memref<32x2xf32, #tpu.memory_space<vmem>>, %arg2: memref<32x2xf32, #tpu.memory_space<vmem>>, %arg3: memref<3xf32, #tpu.memory_space<smem>>, %arg4: memref<1x32x256xf32, #tpu.memory_space<vmem>>, %arg5: memref<1x32x256xf32, #tpu.memory_space<vmem>>) attributes {dimension_semantics = [#tpu.dimension_semantics<parallel>], iteration_bounds = array<i64: 2>, scalar_prefetch = 0 : i64, scratch_operands = 0 : i64, tpu.core_type = #tpu.core_type<tc>, window_params = [{pipeline_mode = #tpu.pipeline_mode<synchronous>, transform_indices = @transform_0, window_bounds = array<i64: 32, 2>}, {pipeline_mode = #tpu.pipeline_mode<synchronous>, transform_indices = @transform_1, window_bounds = array<i64: 32, 2>}, {transform_indices = @transform_2, window_bounds = array<i64: 3>}, {transform_indices = @transform_3, window_bounds = array<i64: 1, 32, 256>}, {transform_indices = @transform_4, window_bounds = array<i64: 1, 32, 256>}]} {
    %c0 = arith.constant 0 : index
    %c0_0 = arith.constant 0 : index
    %c0_1 = arith.constant 0 : index
    %0 = vector.load %arg4[%c0, %c0_0, %c0_1] : memref<1x32x256xf32, #tpu.memory_space<vmem>>, vector<1x32x256xf32>
    %1 = vector.shape_cast %0 : vector<1x32x256xf32> to vector<32x256xf32>
    %cst = arith.constant dense<0.000000e+00> : vector<32xf32>
    %2 = vector.multi_reduction <add>, %1, %cst [1] : vector<32x256xf32> to vector<32xf32>
    %3 = vector.shape_cast %2 : vector<32xf32> to vector<32x1xf32>
    %cst_2 = arith.constant 3.906250e-03 : f32
    %4 = vector.broadcast %cst_2 : f32 to vector<32x1xf32>
    %5 = arith.mulf %3, %4 : vector<32x1xf32>
    %c0_3 = arith.constant 0 : index
    %c0_4 = arith.constant 0 : index
    %6 = vector.load %arg1[%c0_3, %c0_4] : memref<32x2xf32, #tpu.memory_space<vmem>>, vector<32x2xf32>
    %7 = vector.broadcast %5 : vector<32x1xf32> to vector<32x2xf32>
    %8 = arith.mulf %6, %7 : vector<32x2xf32>
    %cst_5 = arith.constant dense<0.000000e+00> : vector<2xf32>
    %9 = vector.multi_reduction <add>, %8, %cst_5 [0] : vector<32x2xf32> to vector<2xf32>
    %10 = vector.shape_cast %9 : vector<2xf32> to vector<1x2xf32>
    %cst_6 = arith.constant 0.000000e+00 : f32
    %11 = vector.broadcast %cst_6 : f32 to vector<1x2xf32>
    %12 = arith.maximumf %10, %11 : vector<1x2xf32>
    %c0_7 = arith.constant 0 : index
    %c0_8 = arith.constant 0 : index
    %13 = vector.load %arg2[%c0_7, %c0_8] : memref<32x2xf32, #tpu.memory_space<vmem>>, vector<32x2xf32>
    %14 = vector.broadcast %12 : vector<1x2xf32> to vector<32x2xf32>
    %15 = arith.mulf %13, %14 : vector<32x2xf32>
    %cst_9 = arith.constant dense<0.000000e+00> : vector<32xf32>
    %16 = vector.multi_reduction <add>, %15, %cst_9 [1] : vector<32x2xf32> to vector<32xf32>
    %17 = vector.shape_cast %16 : vector<32xf32> to vector<32x1xf32>
    %18 = arith.negf %17 : vector<32x1xf32>
    %19 = math.exp %18 : vector<32x1xf32>
    %cst_10 = arith.constant 1.000000e+00 : f32
    %20 = vector.broadcast %cst_10 : f32 to vector<32x1xf32>
    %21 = arith.addf %20, %19 : vector<32x1xf32>
    %22 = arith.divf %20, %21 : vector<32x1xf32>
    %23 = vector.broadcast %22 : vector<32x1xf32> to vector<32x256xf32>
    %24 = arith.mulf %1, %23 : vector<32x256xf32>
    %cst_11 = arith.constant dense<0.000000e+00> : vector<256xf32>
    %25 = vector.multi_reduction <add>, %24, %cst_11 [0] : vector<32x256xf32> to vector<256xf32>
    %26 = vector.shape_cast %25 : vector<256xf32> to vector<1x256xf32>
    %cst_12 = arith.constant 3.125000e-02 : f32
    %27 = vector.broadcast %cst_12 : f32 to vector<1x256xf32>
    %28 = arith.mulf %26, %27 : vector<1x256xf32>
    %cst_13 = arith.constant dense<0xFF800000> : vector<256xf32>
    %29 = vector.multi_reduction <maximumf>, %24, %cst_13 [0] : vector<32x256xf32> to vector<256xf32>
    %30 = vector.shape_cast %29 : vector<256xf32> to vector<1x256xf32>
    %c0_14 = arith.constant 0 : index
    %31 = memref.load %arg3[%c0_14] : memref<3xf32, #tpu.memory_space<smem>>
    %32 = vector.broadcast %31 : f32 to vector<1x256xf32>
    %33 = arith.mulf %32, %28 : vector<1x256xf32>
    %c1 = arith.constant 1 : index
    %34 = memref.load %arg3[%c1] : memref<3xf32, #tpu.memory_space<smem>>
    %35 = vector.broadcast %34 : f32 to vector<1x256xf32>
    %36 = arith.mulf %35, %30 : vector<1x256xf32>
    %37 = arith.addf %33, %36 : vector<1x256xf32>
    %c2 = arith.constant 2 : index
    %38 = memref.load %arg3[%c2] : memref<3xf32, #tpu.memory_space<smem>>
    %39 = vector.broadcast %38 : f32 to vector<1x256xf32>
    %40 = arith.addf %37, %39 : vector<1x256xf32>
    %41 = arith.negf %40 : vector<1x256xf32>
    %42 = math.exp %41 : vector<1x256xf32>
    %cst_15 = arith.constant 1.000000e+00 : f32
    %43 = vector.broadcast %cst_15 : f32 to vector<1x256xf32>
    %44 = arith.addf %43, %42 : vector<1x256xf32>
    %45 = arith.divf %43, %44 : vector<1x256xf32>
    %46 = vector.broadcast %45 : vector<1x256xf32> to vector<32x256xf32>
    %47 = arith.mulf %24, %46 : vector<32x256xf32>
    %48 = arith.addf %1, %47 : vector<32x256xf32>
    %c0_16 = arith.constant 0 : index
    %c0_17 = arith.constant 0 : index
    %c0_18 = arith.constant 0 : index
    %49 = vector.load %arg5[%c0_16, %c0_17, %c0_18] : memref<1x32x256xf32, #tpu.memory_space<vmem>>, vector<1x32x256xf32>
    %50 = vector.shape_cast %49 : vector<1x32x256xf32> to vector<32x256xf32>
    %51 = vector.shape_cast %48 : vector<32x256xf32> to vector<1x32x256xf32>
    tpu.vector_store %arg5[%c0_16, %c0_17, %c0_18], %51 {strides = array<i32>} : memref<1x32x256xf32, #tpu.memory_space<vmem>>, vector<1x32x256xf32>,
    return
  }
  func.func @transform_0(%arg0: i32) -> (i32, i32) {
    %c0_i32 = arith.constant 0 : i32
    %c0_i32_0 = arith.constant 0 : i32
    %c0_i32_1 = arith.constant 0 : i32
    return %c0_i32, %c0_i32_0 : i32, i32
  }
  func.func @transform_1(%arg0: i32) -> (i32, i32) {
    %c0_i32 = arith.constant 0 : i32
    %c0_i32_0 = arith.constant 0 : i32
    %c0_i32_1 = arith.constant 0 : i32
    return %c0_i32, %c0_i32_0 : i32, i32
  }
  func.func @transform_2(%arg0: i32) -> i32 {
    %c0_i32 = arith.constant 0 : i32
    %c0_i32_0 = arith.constant 0 : i32
    return %c0_i32 : i32
  }
  func.func @transform_3(%arg0: i32) -> (i32, i32, i32) {
    %c0_i32 = arith.constant 0 : i32
    %c0_i32_0 = arith.constant 0 : i32
    %c0_i32_1 = arith.constant 0 : i32
    return %arg0, %c0_i32, %c0_i32_0 : i32, i32, i32
  }
  func.func @transform_4(%arg0: i32) -> (i32, i32, i32) {
    %c0_i32 = arith.constant 0 : i32
    %c0_i32_0 = arith.constant 0 : i32
    %c0_i32_1 = arith.constant 0 : i32
    return %arg0, %c0_i32, %c0_i32_0 : i32, i32, i32
  }
}

</mosaic_0001>

<llo_original>
// kernel: channel_spatial_attention.1
$region0: #{channel_spatial_attention.1}
  #allocation0 [shape = 'u32[]', space=smem, size = 0x4, offset = 0x4, fixed_abs, tag = 'smem constant byte address 0x4 - core index']
  #allocation1 [shape = 'u32[144,128]{1,0:T(1,128)}', space=vmem, size = 0x12000, scoped, tag = 'internal scratch']
  %s0 = inlined_call_operand.vmem [shape: f32[32,2], index: 0, kind: input, shape index: {}]
  %s1 = inlined_call_operand.vmem [shape: f32[32,2], index: 1, kind: input, shape index: {}]
  %s2 = inlined_call_operand.vmem [shape: f32[3], index: 2, kind: input, shape index: {}]
  %s3 = inlined_call_operand.vmem [shape: f32[2,32,256], index: 3, kind: input, shape index: {}]
  %s4 = inlined_call_operand.vmem [shape: f32[2,32,256], index: 4, kind: output, shape index: {}]
  %s5 = sld [smem:[#allocation0]]
  $region53: #{channel_spatial_attention.1} parent=0
    _
  %s7 = ssub.s32 1, %s5
  %s8 = scalar_select 0, %s7, %s5
  $region1: #{channel_spatial_attention.1} parent=0
    #allocation2 [shape = 'u8[512]{0}', space=smem, size = 0x200, scoped, tag = 'input window, operand 2, single buffered']
    #allocation3 [shape = 's32[2]{0}', space=sflag, size = 0x8, scoped, tag = 'scoped memory for channel_spatial_attention.1']
    %9 = vsyncpa [#allocation3], 0
    loop: start=0, step=1, limit=4
    $region2: #{channel_spatial_attention.1} parent=1 // loop_pre_header
      _
    $region3: #{channel_spatial_attention.1} parent=1 // loop_header
      %s11 = sphi 0, %s15
      %p12 = scmp.ge.s32.totalorder %s11, 4
      %s19 = sphi 0, %s19
      %s21 = sphi 0, %s19
      %s22 = sphi 0, %s21
      %s36 = sphi 0, %s22
      %s40 = sphi 0, %s40
      %s42 = sphi 0, %s40
      %s43 = sphi 0, %s42
      %s57 = sphi 0, %s43
      %s61 = sphi 0, %s61
      %s63 = sphi 0, %s61
      %s64 = sphi 0, %s63
      %s78 = sphi 0, %s64
      %s84 = sphi 0, %s86
      %s87 = sphi 0, %s84
      %s88 = sphi 0, %s87
      %s104 = sphi 0, %s88
      %s110 = sphi 0, %s112
      %s113 = sphi 0, %s110
      %s114 = sphi 0, %s113
      %s130 = sphi 0, %s114
    $region4: #{channel_spatial_attention.1} parent=1 // loop_header_branch
      %14 = sbr.rel (%p12) target = $region8
    $region5: #{channel_spatial_attention.1} parent=1 // loop_body
      %s16 = ssub.s32 %s11, 1
      %s17 = ssub.s32 %s11, 2
      %s18 = sadd.s32 %s11, 1
      %s20 = sadd.s32 %s19, 1
      %p23 = scmp.eq.s32.totalorder %s11, 1
      %p24 = scmp.ne.s32.totalorder %s19, %s21
      %p25 = scmp.eq.s32.totalorder %s11, 0
      %p26 = por %p24, %p25
      %p27 = scmp.ne.s32.totalorder %s19, %s21
      %p28 = scmp.eq.s32.totalorder %s16, 1
      %p29 = por %p27, %p28
      %p30 = scmp.ne.s32.totalorder %s21, %s22
      %p31 = scmp.eq.s32.totalorder %s16, 0
      %p32 = por %p30, %p31
      %p33 = scmp.ne.s32.totalorder %s21, %s22
      %p34 = scmp.eq.s32.totalorder %s17, 1
      %p35 = por %p33, %p34
      %p37 = scmp.ne.s32.totalorder %s22, %s36
      %p38 = scmp.eq.s32.totalorder %s17, 0
      %p39 = por %p37, %p38
      %s41 = sadd.s32 %s40, 1
      %p44 = scmp.eq.s32.totalorder %s11, 1
      %p45 = scmp.ne.s32.totalorder %s40, %s42
      %p46 = scmp.eq.s32.totalorder %s11, 0
      %p47 = por %p45, %p46
      %p48 = scmp.ne.s32.totalorder %s40, %s42
      %p49 = scmp.eq.s32.totalorder %s16, 1
      %p50 = por %p48, %p49
      %p51 = scmp.ne.s32.totalorder %s42, %s43
      %p52 = scmp.eq.s32.totalorder %s16, 0
      %p53 = por %p51, %p52
      %p54 = scmp.ne.s32.totalorder %s42, %s43
      %p55 = scmp.eq.s32.totalorder %s17, 1
      %p56 = por %p54, %p55
      %p58 = scmp.ne.s32.totalorder %s43, %s57
      %p59 = scmp.eq.s32.totalorder %s17, 0
      %p60 = por %p58, %p59
      %s62 = sadd.s32 %s61, 1
      %p65 = scmp.eq.s32.totalorder %s11, 1
      %p66 = scmp.ne.s32.totalorder %s61, %s63
      %p67 = scmp.eq.s32.totalorder %s11, 0
      %p68 = por %p66, %p67
      %p69 = scmp.ne.s32.totalorder %s61, %s63
      %p70 = scmp.eq.s32.totalorder %s16, 1
      %p71 = por %p69, %p70
      %p72 = scmp.ne.s32.totalorder %s63, %s64
      %p73 = scmp.eq.s32.totalorder %s16, 0
      %p74 = por %p72, %p73
      %p75 = scmp.ne.s32.totalorder %s63, %s64
      %p76 = scmp.eq.s32.totalorder %s17, 1
      %p77 = por %p75, %p76
      %p79 = scmp.ne.s32.totalorder %s64, %s78
      %p80 = scmp.eq.s32.totalorder %s17, 0
      %p81 = por %p79, %p80
      %s82 = ssub.s32 %s11, %s18
      %p83 = scmp.eq.s32.totalorder %s82, 0
      %s85 = sadd.s32 %s84, 1
      %s86 = scalar_select %p83, %s84, %s85
      %p89 = pneg %p83
      %p90 = scmp.eq.s32.totalorder %s11, 1
      %p91 = por %p89, %p90
      %p92 = scmp.ne.s32.totalorder %s84, %s87
      %p93 = scmp.eq.s32.totalorder %s11, 0
      %p94 = por %p92, %p93
      %p95 = scmp.ne.s32.totalorder %s84, %s87
      %p96 = scmp.eq.s32.totalorder %s16, 1
      %p97 = por %p95, %p96
      %p98 = scmp.ne.s32.totalorder %s87, %s88
      %p99 = scmp.eq.s32.totalorder %s16, 0
      %p100 = por %p98, %p99
      %p101 = scmp.ne.s32.totalorder %s87, %s88
      %p102 = scmp.eq.s32.totalorder %s17, 1
      %p103 = por %p101, %p102
      %p105 = scmp.ne.s32.totalorder %s88, %s104
      %p106 = scmp.eq.s32.totalorder %s17, 0
      %p107 = por %p105, %p106
      %s108 = ssub.s32 %s11, %s18
      %p109 = scmp.eq.s32.totalorder %s108, 0
      %s111 = sadd.s32 %s110, 1
      %s112 = scalar_select %p109, %s110, %s111
      %p115 = pneg %p109
      %p116 = scmp.eq.s32.totalorder %s11, 1
      %p117 = por %p115, %p116
      %p118 = scmp.ne.s32.totalorder %s110, %s113
      %p119 = scmp.eq.s32.totalorder %s11, 0
      %p120 = por %p118, %p119
      %p121 = scmp.ne.s32.totalorder %s110, %s113
      %p122 = scmp.eq.s32.totalorder %s16, 1
      %p123 = por %p121, %p122
      %p124 = scmp.ne.s32.totalorder %s113, %s114
      %p125 = scmp.eq.s32.totalorder %s16, 0
      %p126 = por %p124, %p125
      %p127 = scmp.ne.s32.totalorder %s113, %s114
      %p128 = scmp.eq.s32.totalorder %s17, 1
      %p129 = por %p127, %p128
      %p131 = scmp.ne.s32.totalorder %s114, %s130
      %p132 = scmp.eq.s32.totalorder %s17, 0
      %p133 = por %p131, %p132
      %p134 = scmp.le.s32.totalorder 1, %s11
      %p135 = scmp.lt.s32.totalorder %s11, 3
      %p136 = pnand %p134, %p135
      %p137 = pneg %p136
      // Predicated region
      $region9: #{channel_spatial_attention.1} parent=5 // pred_check
        _
      $region10: #{channel_spatial_attention.1} parent=5 // pred_check_branch
        %139 = sbr.rel (%p136) target = $region12
      $region11: #{channel_spatial_attention.1} parent=5 // pred_region
        %s140 = ssub.s32 %s11, 1
        // Predicated region
        $region13: #{channel_spatial_attention.1} parent=11 // pred_check
          %p141 = pneg %p32
        $region14: #{channel_spatial_attention.1} parent=11 // pred_check_branch
          %143 = sbr.rel (%p141) target = $region16
        $region15: #{channel_spatial_attention.1} parent=11 // pred_region
          _
        $region16: #{channel_spatial_attention.1} parent=11 // pred_fallthru
          _
        // Predicated region
        $region17: #{channel_spatial_attention.1} parent=11 // pred_check
          %p144 = pneg %p53
        $region18: #{channel_spatial_attention.1} parent=11 // pred_check_branch
          %146 = sbr.rel (%p144) target = $region20
        $region19: #{channel_spatial_attention.1} parent=11 // pred_region
          _
        $region20: #{channel_spatial_attention.1} parent=11 // pred_fallthru
          _
        // Predicated region
        $region21: #{channel_spatial_attention.1} parent=11 // pred_check
          %p147 = pneg %p74
        $region22: #{channel_spatial_attention.1} parent=11 // pred_check_branch
          %149 = sbr.rel (%p147) target = $region24
        $region23: #{channel_spatial_attention.1} parent=11 // pred_region
          %s151 = ssub.s32 16, 16
          %152 = vsyncadd [#allocation3], %s151
          %s154 = sshll.u32 %s2, 4
          %s155 = int_to_ptr.vmem [resolvable:$true] %s154
          %157 = dma.vmem_to_smem %s155, 16, [#allocation2], [#allocation3]
        $region24: #{channel_spatial_attention.1} parent=11 // pred_fallthru
          _
      $region12: #{channel_spatial_attention.1} parent=5 // pred_fallthru
        _
      %p158 = scmp.lt.s32.totalorder %s11, 2
      // Predicated region
      $region25: #{channel_spatial_attention.1} parent=5 // pred_check
        %p159 = pneg %p158
      $region26: #{channel_spatial_attention.1} parent=5 // pred_check_branch
        %161 = sbr.rel (%p159) target = $region28
      $region27: #{channel_spatial_attention.1} parent=5 // pred_region
        // Predicated region
        $region29: #{channel_spatial_attention.1} parent=27 // pred_check
          %p162 = pneg %p94
        $region30: #{channel_spatial_attention.1} parent=27 // pred_check_branch
          %164 = sbr.rel (%p162) target = $region32
        $region31: #{channel_spatial_attention.1} parent=27 // pred_region
          %p165 = scmp.lt.s32.totalorder %s11, 1
          %s166 = scalar_select %p165, %s11, 1
          %s167 = smul.addr %s166, 8
          %s168 = smul.addr %s167, 8
          %s169 = scalar_lea.vmem %s3, %s168
        $region32: #{channel_spatial_attention.1} parent=27 // pred_fallthru
          _
      $region28: #{channel_spatial_attention.1} parent=5 // pred_fallthru
        _
      %p170 = scmp.le.s32.totalorder 1, %s11
      %p171 = scmp.lt.s32.totalorder %s11, 3
      %p172 = pnand %p170, %p171
      %p173 = pneg %p172
      // Predicated region
      $region33: #{channel_spatial_attention.1} parent=5 // pred_check
        _
      $region34: #{channel_spatial_attention.1} parent=5 // pred_check_branch
        %175 = sbr.rel (%p172) target = $region36
      $region35: #{channel_spatial_attention.1} parent=5 // pred_region
        %s176 = ssub.s32 %s11, 1
        // Predicated region
        $region37: #{channel_spatial_attention.1} parent=35 // pred_check
          %p177 = pneg %p74
        $region38: #{channel_spatial_attention.1} parent=35 // pred_check_branch
          %179 = sbr.rel (%p177) target = $region40
        $region39: #{channel_spatial_attention.1} parent=35 // pred_region
          %180 = dma.done [#allocation3], 16
        $region40: #{channel_spatial_attention.1} parent=35 // pred_fallthru
          _
        %181 = sfence
        %p182 = pneg %p32
        %p183 = pneg %p29
        %p184 = pneg %p53
        %p185 = pneg %p50
        %p186 = pneg %p74
        %p187 = pneg %p71
        %p188 = scmp.lt.s32.totalorder %s16, 1
        %s189 = scalar_select %p188, %s16, 1
        %s190 = smul.addr %s189, 8
        %s191 = smul.addr %s190, 8
        %s192 = scalar_lea.vmem %s3, %s191
        %p193 = pneg %p100
        %p194 = pneg %p97
        %p195 = pneg %p126
        %p196 = pneg %p123
        %p197 = scmp.lt.s32.totalorder %s16, 1
        %s198 = scalar_select %p197, %s16, 1
        %s199 = smul.addr %s198, 8
        %s200 = smul.addr %s199, 8
        %s201 = scalar_lea.vmem %s4, %s200
        %p202 = scmp.lt.s32.totalorder %s16, 1
        %s203 = scalar_select %p202, %s16, 1
        %s204 = smul.addr %s203, 8
        %s205 = smul.addr %s204, 8
        %s206 = scalar_lea.vmem %s3, %s205
        %p207 = scmp.lt.s32.totalorder %s16, 1
        %s208 = scalar_select %p207, %s16, 1
        %s209 = smul.addr %s208, 8
        %s210 = smul.addr %s209, 8
        %s211 = scalar_lea.vmem %s4, %s210
        %v212 = vld [vmem:[%s206] sm:$0xff]
        %v213 = vld [vmem:[%s206 + $0x8] sm:$0xff]
        %v214 = vld [vmem:[%s206 + $0x10] sm:$0xff]
        %v215 = vld [vmem:[%s206 + $0x18] sm:$0xff]
        %v216 = vld [vmem:[%s206 + $0x20] sm:$0xff]
        %v217 = vld [vmem:[%s206 + $0x28] sm:$0xff]
        %v218 = vld [vmem:[%s206 + $0x30] sm:$0xff]
        %v219 = vld [vmem:[%s206 + $0x38] sm:$0xff]
        %v220 = vadd.f32 %v212, %v213
        %221 = vadd.xlane.f32.xlu0 %v220
        %v222 = vpop.xlane.xlu0 %221
        %v223 = vadd.f32 %v214, %v215
        %224 = vadd.xlane.f32.xlu0 %v223
        %v225 = vpop.xlane.xlu0 %224
        %v226 = vadd.f32 %v216, %v217
        %227 = vadd.xlane.f32.xlu0 %v226
        %v228 = vpop.xlane.xlu0 %227
        %v229 = vadd.f32 %v218, %v219
        %230 = vadd.xlane.f32.xlu0 %v229
        %v231 = vpop.xlane.xlu0 %230
        %v232 = vmul.f32 %v222, 0.00390625
        %v233 = vmul.f32 %v225, 0.00390625
        %v234 = vmul.f32 %v228, 0.00390625
        %v235 = vmul.f32 %v231, 0.00390625
        %v236 = vld [vmem:[%s0] sm:$0xff]
        %v237 = vld [vmem:[%s0 + $0x8] sm:$0xff]
        %v238 = vld [vmem:[%s0 + $0x10] sm:$0xff]
        %v239 = vld [vmem:[%s0 + $0x18] sm:$0xff]
        %v240 = vmul.f32 %v236, %v232
        %v241 = vmul.f32 %v237, %v233
        %v242 = vmul.f32 %v238, %v234
        %v243 = vmul.f32 %v239, %v235
        %vm244 = vcmask 15360
        %v245 = vsel %vm244, %v240, 0.0
        %v246 = vsel %vm244, %v241, 0.0
        %v247 = vadd.f32 %v245, %v246
        %v248 = vsel %vm244, %v242, 0.0
        %v249 = vadd.f32 %v247, %v248
        %v250 = vsel %vm244, %v243, 0.0
        %v251 = vadd.f32 %v249, %v250
        %v252 = vrot.slane %v251, 4
        %v253 = vadd.f32 %v251, %v252
        %v254 = vrot.slane %v253, 2
        %v255 = vadd.f32 %v253, %v254
        %v256 = vrot.slane %v255, 1
        %v257 = vadd.f32 %v255, %v256
        %v258 = vmax.f32 %v257, 0.0
        %v259 = vld [vmem:[%s1] sm:$0xff]
        %v260 = vld [vmem:[%s1 + $0x8] sm:$0xff]
        %v261 = vld [vmem:[%s1 + $0x10] sm:$0xff]
        %v262 = vld [vmem:[%s1 + $0x18] sm:$0xff]
        %v263 = vmul.f32 %v259, %v258
        %v264 = vmul.f32 %v260, %v258
        %v265 = vmul.f32 %v261, %v258
        %v266 = vmul.f32 %v262, %v258
        %v267 = vsel %vm244, %v263, 0.0
        %268 = vadd.xlane.f32.xlu0 %v267
        %v269 = vpop.xlane.xlu0 %268
        %v270 = vsel %vm244, %v264, 0.0
        %271 = vadd.xlane.f32.xlu0 %v270
        %v272 = vpop.xlane.xlu0 %271
        %v273 = vsel %vm244, %v265, 0.0
        %274 = vadd.xlane.f32.xlu0 %v273
        %v275 = vpop.xlane.xlu0 %274
        %v276 = vsel %vm244, %v266, 0.0
        %277 = vadd.xlane.f32.xlu0 %v276
        %v278 = vpop.xlane.xlu0 %277
        %v279 = vxor.u32 %v269, 2147483648
        %v280 = vxor.u32 %v272, 2147483648
        %v281 = vxor.u32 %v275, 2147483648
        %v282 = vxor.u32 %v278, 2147483648
        %v283 = vmul.f32 %v279, 1.442695
        %v284 = vpow.pop %v283
        %v285 = vmul.f32 %v280, 1.442695
        %v286 = vpow.pop %v285
        %v287 = vmul.f32 %v281, 1.442695
        %v288 = vpow.pop %v287
        %v289 = vmul.f32 %v282, 1.442695
        %v290 = vpow.pop %v289
        %v291 = vadd.f32 %v284, 1.0
        %v292 = vadd.f32 %v286, 1.0
        %v293 = vadd.f32 %v288, 1.0
        %v294 = vadd.f32 %v290, 1.0
        %v295 = vrcp.pop %v291
        %v296 = vmul.f32 1.0, %v295
        %v297 = vrcp.pop %v292
        %v298 = vmul.f32 1.0, %v297
        %v299 = vrcp.pop %v293
        %v300 = vmul.f32 1.0, %v299
        %v301 = vrcp.pop %v294
        %v302 = vmul.f32 1.0, %v301
        %v303 = vmul.f32 %v212, %v296
        %v304 = vmul.f32 %v213, %v296
        %v305 = vmul.f32 %v214, %v298
        %v306 = vmul.f32 %v215, %v298
        %v307 = vmul.f32 %v216, %v300
        %v308 = vmul.f32 %v217, %v300
        %v309 = vmul.f32 %v218, %v302
        %v310 = vmul.f32 %v219, %v302
        %v311 = vadd.f32 %v303, %v305
        %v312 = vadd.f32 %v311, %v307
        %v313 = vadd.f32 %v312, %v309
        %v314 = vrot.slane %v313, 4
        %v315 = vadd.f32 %v313, %v314
        %v316 = vrot.slane %v315, 2
        %v317 = vadd.f32 %v315, %v316
        %v318 = vrot.slane %v317, 1
        %v319 = vadd.f32 %v317, %v318
        %v320 = vadd.f32 %v304, %v306
        %v321 = vadd.f32 %v320, %v308
        %v322 = vadd.f32 %v321, %v310
        %v323 = vrot.slane %v322, 4
        %v324 = vadd.f32 %v322, %v323
        %v325 = vrot.slane %v324, 2
        %v326 = vadd.f32 %v324, %v325
        %v327 = vrot.slane %v326, 1
        %v328 = vadd.f32 %v326, %v327
        %v329 = vmul.f32 %v319, 0.03125
        %v330 = vmul.f32 %v328, 0.03125
        %v331 = vmax.f32 %v303, %v307
        %v332 = vmax.f32 %v305, %v309
        %v333 = vmax.f32 %v331, %v332
        %v334 = vrot.slane %v333, 4
        %v335 = vmax.f32 %v333, %v334
        %v336 = vrot.slane %v335, 2
        %v337 = vmax.f32 %v335, %v336
        %v338 = vrot.slane %v337, 1
        %v339 = vmax.f32 %v337, %v338
        %v340 = vmax.f32 %v304, %v308
        %v341 = vmax.f32 %v306, %v310
        %v342 = vmax.f32 %v340, %v341
        %v343 = vrot.slane %v342, 4
        %v344 = vmax.f32 %v342, %v343
        %v345 = vrot.slane %v344, 2
        %v346 = vmax.f32 %v344, %v345
        %v347 = vrot.slane %v346, 1
        %v348 = vmax.f32 %v346, %v347
        %s349 = sld [smem:[#allocation2]]
        %v350 = vstv %s349
        %v351 = vmul.f32 %v350, %v329
        %v352 = vmul.f32 %v350, %v330
        %s353 = sld [smem:[#allocation2 + $0x1]]
        %v354 = vstv %s353
        %v355 = vmul.f32 %v354, %v339
        %v356 = vmul.f32 %v354, %v348
        %v357 = vadd.f32 %v351, %v355
        %v358 = vadd.f32 %v352, %v356
        %s359 = sld [smem:[#allocation2 + $0x2]]
        %v360 = vstv %s359
        %v361 = vadd.f32 %v357, %v360
        %v362 = vadd.f32 %v358, %v360
        %v363 = vxor.u32 %v361, 2147483648
        %v364 = vxor.u32 %v362, 2147483648
        %v365 = vmul.f32 %v363, 1.442695
        %v366 = vpow.pop %v365
        %v367 = vmul.f32 %v364, 1.442695
        %v368 = vpow.pop %v367
        %v369 = vadd.f32 %v366, 1.0
        %v370 = vadd.f32 %v368, 1.0
        %v371 = vrcp.pop %v369
        %v372 = vmul.f32 1.0, %v371
        %v373 = vrcp.pop %v370
        %v374 = vmul.f32 1.0, %v373
        %v375 = vmul.f32 %v303, %v372
        %v376 = vmul.f32 %v304, %v374
        %v377 = vmul.f32 %v305, %v372
        %v378 = vmul.f32 %v306, %v374
        %v379 = vmul.f32 %v307, %v372
        %v380 = vmul.f32 %v308, %v374
        %v381 = vmul.f32 %v309, %v372
        %v382 = vmul.f32 %v310, %v374
        %v383 = vadd.f32 %v212, %v375
        %v384 = vadd.f32 %v213, %v376
        %v385 = vadd.f32 %v214, %v377
        %v386 = vadd.f32 %v215, %v378
        %v387 = vadd.f32 %v216, %v379
        %v388 = vadd.f32 %v217, %v380
        %v389 = vadd.f32 %v218, %v381
        %v390 = vadd.f32 %v219, %v382
        %391 = vst [vmem:[%s211] sm:$0xff] %v383
        %392 = vst [vmem:[%s211 + $0x8] sm:$0xff] %v384
        %393 = vst [vmem:[%s211 + $0x10] sm:$0xff] %v385
        %394 = vst [vmem:[%s211 + $0x18] sm:$0xff] %v386
        %395 = vst [vmem:[%s211 + $0x20] sm:$0xff] %v387
        %396 = vst [vmem:[%s211 + $0x28] sm:$0xff] %v388
        %397 = vst [vmem:[%s211 + $0x30] sm:$0xff] %v389
        %398 = vst [vmem:[%s211 + $0x38] sm:$0xff] %v390
        %p399 = scmp.lt.s32.totalorder %s16, 1
        %s400 = scalar_select %p399, %s16, 1
        %s401 = smul.addr %s400, 8
        %s402 = smul.addr %s401, 8
        %s403 = scalar_lea.vmem %s4, %s402
        // Predicated region
        $region41: #{channel_spatial_attention.1} parent=35 // pred_check
          %p404 = pneg %p123
        $region42: #{channel_spatial_attention.1} parent=35 // pred_check_branch
          %406 = sbr.rel (%p404) target = $region44
        $region43: #{channel_spatial_attention.1} parent=35 // pred_region
          _
        $region44: #{channel_spatial_attention.1} parent=35 // pred_fallthru
          _
      $region36: #{channel_spatial_attention.1} parent=5 // pred_fallthru
        _
      %p407 = scmp.le.s32.totalorder 2, %s11
      // Predicated region
      $region45: #{channel_spatial_attention.1} parent=5 // pred_check
        %p408 = pneg %p407
      $region46: #{channel_spatial_attention.1} parent=5 // pred_check_branch
        %410 = sbr.rel (%p408) target = $region48
      $region47: #{channel_spatial_attention.1} parent=5 // pred_region
        %s411 = ssub.s32 %s11, 2
        // Predicated region
        $region49: #{channel_spatial_attention.1} parent=47 // pred_check
          %p412 = pneg %p129
        $region50: #{channel_spatial_attention.1} parent=47 // pred_check_branch
          %414 = sbr.rel (%p412) target = $region52
        $region51: #{channel_spatial_attention.1} parent=47 // pred_region
          %p415 = scmp.lt.s32.totalorder %s17, 1
          %s416 = scalar_select %p415, %s17, 1
          %s417 = smul.addr %s416, 8
          %s418 = smul.addr %s417, 8
          %s419 = scalar_lea.vmem %s4, %s418
        $region52: #{channel_spatial_attention.1} parent=47 // pred_fallthru
          _
      $region48: #{channel_spatial_attention.1} parent=5 // pred_fallthru
        _
    $region6: #{channel_spatial_attention.1} parent=1 // loop_footer
      %s15 = sadd.s32 1, %s11
    $region7: #{channel_spatial_attention.1} parent=1 // loop_footer_branch
      %10 = sbr.rel target = $region3
    $region8: #{channel_spatial_attention.1} parent=1 // loop_exit
      _
    %420 = vsyncpa [#allocation3], 1
    %s421 = scalar_lea.sflag [#allocation3], 1
    %422 = vsyncpa %s421, 1

</llo_original>
